<compile_context>
chip_gen: v5e
topology: v5e:2x2
jax: 0.10.0
libtpu: 0.0.40
codegen_flags: <defaults>
</compile_context>

<pallas_src>
import functools

import jax
import jax.numpy as jnp
from jax.experimental import pallas as pl
from jax.experimental.pallas import tpu as pltpu

EPS = 1e-5          # nn.BatchNorm1d default eps
SLOPE = 0.1         # BasicBlock default leakyrelu_negative_slope (passed explicitly below)
MXU_LANES = 128     # lane-dense output width for the merged first-stage matmul


def _leaky(h, slope):
    return jnp.where(h >= 0, h, slope * h)


def _bn_stats(v, inv_n):
    # One-pass train-mode BatchNorm1d statistics over the N axis:
    # mean = E[v], biased var = E[v^2] - E[v]^2  (single reduction sweep).
    s = jnp.sum(v, axis=0, keepdims=True)
    ss = jnp.sum(v * v, axis=0, keepdims=True)
    mean = s * inv_n
    var = ss * inv_n - mean * mean
    return mean, jax.lax.rsqrt(var + EPS)


# ---- fused BasicBlock kernel ----------------------------------------------

def basic_block_kernel(x_ref, pcin_ref, pw_ref, wcat_ref, wout_ref, out_ref,
                       *, slope, width, cout):
    x = x_ref[...]                                    # (N, Cin) f32, read once
    inv_n = jnp.float32(1.0 / x.shape[0])

    # ---- shared normalize of x (identity branch and input MLP both BN the same x) ----
    mean_x, rstd_x = _bn_stats(x, inv_n)
    xhat = (x - mean_x) * rstd_x

    pcin = pcin_ref[...]                              # (4, Cin): [g_id, b_id, g_in, b_in]
    a_id = _leaky(xhat * pcin[0:1] + pcin[1:2], slope)   # identity-branch activation
    a_in = _leaky(xhat * pcin[2:3] + pcin[3:4], slope)   # input-MLP activation

    # ---- merged lane-dense MXU call ----
    # [a_id | a_in] (N, 2*Cin) @ blockdiag(W_id, W_in) padded to (2*Cin, 128):
    #   lanes [0, Cout)          -> identity = LReLU(BN_id(x)) @ W_id
    #   lanes [Cout, Cout+width) -> h1       = LReLU(BN_in(x)) @ W_in
    a_cat = jnp.concatenate([a_id, a_in], axis=1).astype(jnp.bfloat16)
    mm = jnp.dot(a_cat, wcat_ref[...], preferred_element_type=jnp.float32)  # (N, 128) f32
    identity = mm[:, :cout]                           # (N, Cout), stays in VMEM
    h1 = mm[:, cout:cout + width]                     # (N, width), stays in VMEM

    pw = pw_ref[...]                                  # (4, width): [g2, b2, g_out, b_out]

    # ---- input-MLP tail: BN(width) -> LeakyReLU ----
    mean1, rstd1 = _bn_stats(h1, inv_n)
    h2 = _leaky((h1 - mean1) * rstd1 * pw[0:1] + pw[1:2], slope)

    # ---- CDConv stage ----
    # TODO(synk): CDConv source was not provided; the continuous-discrete conv
    # (radius/sequence-window gather + WeightNet aggregation) is passed through
    # unchanged (width -> width identity) rather than faked.
    h3 = h2

    # ---- output Linear block: BN(width) -> LeakyReLU -> Linear -> + identity ----
    mean3, rstd3 = _bn_stats(h3, inv_n)
    a_out = _leaky((h3 - mean3) * rstd3 * pw[2:3] + pw[3:4], slope).astype(jnp.bfloat16)
    out_ref[...] = (
        jnp.dot(a_out, wout_ref[...], preferred_element_type=jnp.float32) + identity
    )


# ---- wrapper ----------------------------------------------------------------

def basic_block_forward(params, x, pos, seq, ori, batch, slope=SLOPE):
    """Fused BasicBlock forward.  pos/seq/ori/batch are CDConv inputs (see TODO)."""
    n = x.shape[0]
    # TODO(synk): this fused kernel keeps the whole problem VMEM-resident (~704 B of
    # live data per row at Cin=32/width=16/Cout=64, i.e. tens of thousands of rows).
    # For larger N a row-tiled multi-pass variant with globally-accumulated BN
    # statistics (two-pass BN per normalization) is required — not implemented here.
    vspec = pl.BlockSpec(memory_space=pltpu.MemorySpace.VMEM)
    kern = functools.partial(
        basic_block_kernel, slope=slope, width=params["width"], cout=params["cout"]
    )
    return pl.pallas_call(
        kern,
        out_shape=jax.ShapeDtypeStruct((n, params["cout"]), jnp.float32),
        in_specs=[vspec] * 5,
        out_specs=vspec,
    )(x, params["p_cin"], params["p_w"], params["w_cat"], params["w_out"])


# ---- parameter construction (deterministic, synthetic) ----------------------

def _linear_weight(key, c_in, c_out):
    # PyTorch nn.Linear init: U(-1/sqrt(fan_in), 1/sqrt(fan_in)); stored (c_in, c_out).
    bound = 1.0 / jnp.sqrt(jnp.float32(c_in))
    return jax.random.uniform(key, (c_in, c_out), jnp.float32, -bound, bound)


def init_basic_block_params(key, in_channels, out_channels, base_width=16.0):
    width = int(out_channels * (base_width / 64.0))
    assert out_channels + width <= MXU_LANES, "merged matmul assumes Cout+width <= 128"
    k_id, k_in, k_out = jax.random.split(key, 3)

    w_id = _linear_weight(k_id, in_channels, out_channels)   # identity Linear
    w_in = _linear_weight(k_in, in_channels, width)          # input-MLP Linear
    w_out = _linear_weight(k_out, width, out_channels)       # output Linear

    # Block-diagonal, 128-lane-padded weight for the merged first-stage matmul.
    w_cat = jnp.zeros((2 * in_channels, MXU_LANES), jnp.float32)
    w_cat = w_cat.at[:in_channels, :out_channels].set(w_id)
    w_cat = w_cat.at[in_channels:, out_channels:out_channels + width].set(w_in)

    # BatchNorm affine params (PyTorch default init: gamma=1, beta=0), packed.
    p_cin = jnp.stack([jnp.ones(in_channels, jnp.float32),   # gamma  (identity BN)
                       jnp.zeros(in_channels, jnp.float32),  # beta
                       jnp.ones(in_channels, jnp.float32),   # gamma  (input-MLP BN)
                       jnp.zeros(in_channels, jnp.float32)]) # beta
    p_w = jnp.stack([jnp.ones(width, jnp.float32),           # gamma (MLP-tail BN)
                     jnp.zeros(width, jnp.float32),          # beta
                     jnp.ones(width, jnp.float32),           # gamma (output BN)
                     jnp.zeros(width, jnp.float32)])         # beta

    return dict(
        cin=in_channels, width=width, cout=out_channels,
        p_cin=p_cin, p_w=p_w,
        w_cat=w_cat.astype(jnp.bfloat16),   # bf16 MXU operands, f32 accumulate
        w_out=w_out.astype(jnp.bfloat16),
    )


if __name__ == "__main__":
    key = jax.random.PRNGKey(0)
    k_params, k_x, k_pos, k_ori = jax.random.split(key, 4)

    # Small shapes consistent with the module:
    #   N points, in_channels=32, out_channels=64, base_width=16 -> width=16
    N, IN_C, OUT_C = 64, 32, 64
    params = init_basic_block_params(k_params, IN_C, OUT_C, base_width=16.0)

    x = jax.random.normal(k_x, (N, IN_C), jnp.float32)
    pos = jax.random.normal(k_pos, (N, 3), jnp.float32)
    seq = jnp.arange(N, dtype=jnp.float32)
    ori = jax.random.normal(k_ori, (N, 9), jnp.float32)
    batch = jnp.zeros((N,), jnp.int32)

    # Slope passed explicitly (BasicBlock default leakyrelu_negative_slope=0.1).
    out = basic_block_forward(params, x, pos, seq, ori, batch, slope=0.1)
    out = jax.block_until_ready(out)
    assert out.shape == (N, OUT_C) and out.dtype == jnp.float32
    assert bool(jnp.all(jnp.isfinite(out)))
    print("KERNEL_OK")
</pallas_src>

<mosaic_0001>
module attributes {stable_mosaic.version = 11 : i64} {
  func.func @basic_block_kernel(%arg0: memref<64x32xf32, #tpu.memory_space<vmem>>, %arg1: memref<4x32xf32, #tpu.memory_space<vmem>>, %arg2: memref<4x16xf32, #tpu.memory_space<vmem>>, %arg3: memref<64x128xbf16, #tpu.memory_space<vmem>>, %arg4: memref<16x64xbf16, #tpu.memory_space<vmem>>, %arg5: memref<64x64xf32, #tpu.memory_space<vmem>>) attributes {dimension_semantics = [], scalar_prefetch = 0 : i64, scratch_operands = 0 : i64, tpu.core_type = #tpu.core_type<tc>} {
    %c0 = arith.constant 0 : index
    %c0_0 = arith.constant 0 : index
    %0 = vector.load %arg0[%c0, %c0_0] : memref<64x32xf32, #tpu.memory_space<vmem>>, vector<64x32xf32>
    %cst = arith.constant dense<0.000000e+00> : vector<32xf32>
    %1 = vector.multi_reduction <add>, %0, %cst [0] : vector<64x32xf32> to vector<32xf32>
    %2 = vector.shape_cast %1 : vector<32xf32> to vector<1x32xf32>
    %3 = arith.mulf %0, %0 : vector<64x32xf32>
    %cst_1 = arith.constant dense<0.000000e+00> : vector<32xf32>
    %4 = vector.multi_reduction <add>, %3, %cst_1 [0] : vector<64x32xf32> to vector<32xf32>
    %5 = vector.shape_cast %4 : vector<32xf32> to vector<1x32xf32>
    %cst_2 = arith.constant 1.562500e-02 : f32
    %6 = vector.broadcast %cst_2 : f32 to vector<1x32xf32>
    %7 = arith.mulf %2, %6 : vector<1x32xf32>
    %cst_3 = arith.constant 1.562500e-02 : f32
    %8 = vector.broadcast %cst_3 : f32 to vector<1x32xf32>
    %9 = arith.mulf %5, %8 : vector<1x32xf32>
    %10 = arith.mulf %7, %7 : vector<1x32xf32>
    %11 = arith.subf %9, %10 : vector<1x32xf32>
    %cst_4 = arith.constant 9.99999974E-6 : f32
    %12 = vector.broadcast %cst_4 : f32 to vector<1x32xf32>
    %13 = arith.addf %11, %12 : vector<1x32xf32>
    %14 = math.rsqrt %13 : vector<1x32xf32>
    %15 = vector.broadcast %7 : vector<1x32xf32> to vector<64x32xf32>
    %16 = arith.subf %0, %15 : vector<64x32xf32>
    %17 = vector.broadcast %14 : vector<1x32xf32> to vector<64x32xf32>
    %18 = arith.mulf %16, %17 : vector<64x32xf32>
    %c0_5 = arith.constant 0 : index
    %c0_6 = arith.constant 0 : index
    %19 = vector.load %arg1[%c0_5, %c0_6] : memref<4x32xf32, #tpu.memory_space<vmem>>, vector<4x32xf32>
    %20 = vector.extract_strided_slice %19 {offsets = [0, 0], sizes = [1, 32], strides = [1, 1]} : vector<4x32xf32> to vector<1x32xf32>
    %21 = vector.broadcast %20 : vector<1x32xf32> to vector<64x32xf32>
    %22 = arith.mulf %18, %21 : vector<64x32xf32>
    %23 = vector.extract_strided_slice %19 {offsets = [1, 0], sizes = [1, 32], strides = [1, 1]} : vector<4x32xf32> to vector<1x32xf32>
    %24 = vector.broadcast %23 : vector<1x32xf32> to vector<64x32xf32>
    %25 = arith.addf %22, %24 : vector<64x32xf32>
    %cst_7 = arith.constant 0.000000e+00 : f32
    %26 = vector.broadcast %cst_7 : f32 to vector<64x32xf32>
    %27 = arith.cmpf oge, %25, %26 : vector<64x32xf32>
    %cst_8 = arith.constant 1.000000e-01 : f32
    %28 = vector.broadcast %cst_8 : f32 to vector<64x32xf32>
    %29 = arith.mulf %28, %25 : vector<64x32xf32>
    %30 = arith.select %27, %25, %29 : vector<64x32xi1>, vector<64x32xf32>
    %31 = vector.extract_strided_slice %19 {offsets = [2, 0], sizes = [1, 32], strides = [1, 1]} : vector<4x32xf32> to vector<1x32xf32>
    %32 = vector.broadcast %31 : vector<1x32xf32> to vector<64x32xf32>
    %33 = arith.mulf %18, %32 : vector<64x32xf32>
    %34 = vector.extract_strided_slice %19 {offsets = [3, 0], sizes = [1, 32], strides = [1, 1]} : vector<4x32xf32> to vector<1x32xf32>
    %35 = vector.broadcast %34 : vector<1x32xf32> to vector<64x32xf32>
    %36 = arith.addf %33, %35 : vector<64x32xf32>
    %cst_9 = arith.constant 0.000000e+00 : f32
    %37 = vector.broadcast %cst_9 : f32 to vector<64x32xf32>
    %38 = arith.cmpf oge, %36, %37 : vector<64x32xf32>
    %cst_10 = arith.constant 1.000000e-01 : f32
    %39 = vector.broadcast %cst_10 : f32 to vector<64x32xf32>
    %40 = arith.mulf %39, %36 : vector<64x32xf32>
    %41 = arith.select %38, %36, %40 : vector<64x32xi1>, vector<64x32xf32>
    %42 = tpu.concatenate %30, %41 in 1 : vector<64x32xf32>, vector<64x32xf32> -> vector<64x64xf32>
    %43 = arith.truncf %42 : vector<64x64xf32> to vector<64x64xbf16>
    %c0_11 = arith.constant 0 : index
    %c0_12 = arith.constant 0 : index
    %44 = vector.load %arg3[%c0_11, %c0_12] : memref<64x128xbf16, #tpu.memory_space<vmem>>, vector<64x128xbf16>
    %cst_13 = arith.constant dense<0.000000e+00> : vector<64x128xf32>
    %45 = tpu.matmul %43, %44, %cst_13 {dimension_numbers = #tpu.dot_dimension_numbers<[1], [0], [0], [1], [0, 0, 1, 1], [], []>} : vector<64x64xbf16>, vector<64x128xbf16>, vector<64x128xf32> -> vector<64x128xf32>
    %46 = vector.extract_strided_slice %45 {offsets = [0, 0], sizes = [64, 64], strides = [1, 1]} : vector<64x128xf32> to vector<64x64xf32>
    %47 = vector.extract_strided_slice %45 {offsets = [0, 64], sizes = [64, 16], strides = [1, 1]} : vector<64x128xf32> to vector<64x16xf32>
    %c0_14 = arith.constant 0 : index
    %c0_15 = arith.constant 0 : index
    %48 = vector.load %arg2[%c0_14, %c0_15] : memref<4x16xf32, #tpu.memory_space<vmem>>, vector<4x16xf32>
    %cst_16 = arith.constant dense<0.000000e+00> : vector<16xf32>
    %49 = vector.multi_reduction <add>, %47, %cst_16 [0] : vector<64x16xf32> to vector<16xf32>
    %50 = vector.shape_cast %49 : vector<16xf32> to vector<1x16xf32>
    %51 = arith.mulf %47, %47 : vector<64x16xf32>
    %cst_17 = arith.constant dense<0.000000e+00> : vector<16xf32>
    %52 = vector.multi_reduction <add>, %51, %cst_17 [0] : vector<64x16xf32> to vector<16xf32>
    %53 = vector.shape_cast %52 : vector<16xf32> to vector<1x16xf32>
    %cst_18 = arith.constant 1.562500e-02 : f32
    %54 = vector.broadcast %cst_18 : f32 to vector<1x16xf32>
    %55 = arith.mulf %50, %54 : vector<1x16xf32>
    %cst_19 = arith.constant 1.562500e-02 : f32
    %56 = vector.broadcast %cst_19 : f32 to vector<1x16xf32>
    %57 = arith.mulf %53, %56 : vector<1x16xf32>
    %58 = arith.mulf %55, %55 : vector<1x16xf32>
    %59 = arith.subf %57, %58 : vector<1x16xf32>
    %cst_20 = arith.constant 9.99999974E-6 : f32
    %60 = vector.broadcast %cst_20 : f32 to vector<1x16xf32>
    %61 = arith.addf %59, %60 : vector<1x16xf32>
    %62 = math.rsqrt %61 : vector<1x16xf32>
    %63 = vector.broadcast %55 : vector<1x16xf32> to vector<64x16xf32>
    %64 = arith.subf %47, %63 : vector<64x16xf32>
    %65 = vector.broadcast %62 : vector<1x16xf32> to vector<64x16xf32>
    %66 = arith.mulf %64, %65 : vector<64x16xf32>
    %67 = vector.extract_strided_slice %48 {offsets = [0, 0], sizes = [1, 16], strides = [1, 1]} : vector<4x16xf32> to vector<1x16xf32>
    %68 = vector.broadcast %67 : vector<1x16xf32> to vector<64x16xf32>
    %69 = arith.mulf %66, %68 : vector<64x16xf32>
    %70 = vector.extract_strided_slice %48 {offsets = [1, 0], sizes = [1, 16], strides = [1, 1]} : vector<4x16xf32> to vector<1x16xf32>
    %71 = vector.broadcast %70 : vector<1x16xf32> to vector<64x16xf32>
    %72 = arith.addf %69, %71 : vector<64x16xf32>
    %cst_21 = arith.constant 0.000000e+00 : f32
    %73 = vector.broadcast %cst_21 : f32 to vector<64x16xf32>
    %74 = arith.cmpf oge, %72, %73 : vector<64x16xf32>
    %cst_22 = arith.constant 1.000000e-01 : f32
    %75 = vector.broadcast %cst_22 : f32 to vector<64x16xf32>
    %76 = arith.mulf %75, %72 : vector<64x16xf32>
    %77 = arith.select %74, %72, %76 : vector<64x16xi1>, vector<64x16xf32>
    %cst_23 = arith.constant dense<0.000000e+00> : vector<16xf32>
    %78 = vector.multi_reduction <add>, %77, %cst_23 [0] : vector<64x16xf32> to vector<16xf32>
    %79 = vector.shape_cast %78 : vector<16xf32> to vector<1x16xf32>
    %80 = arith.mulf %77, %77 : vector<64x16xf32>
    %cst_24 = arith.constant dense<0.000000e+00> : vector<16xf32>
    %81 = vector.multi_reduction <add>, %80, %cst_24 [0] : vector<64x16xf32> to vector<16xf32>
    %82 = vector.shape_cast %81 : vector<16xf32> to vector<1x16xf32>
    %cst_25 = arith.constant 1.562500e-02 : f32
    %83 = vector.broadcast %cst_25 : f32 to vector<1x16xf32>
    %84 = arith.mulf %79, %83 : vector<1x16xf32>
    %cst_26 = arith.constant 1.562500e-02 : f32
    %85 = vector.broadcast %cst_26 : f32 to vector<1x16xf32>
    %86 = arith.mulf %82, %85 : vector<1x16xf32>
    %87 = arith.mulf %84, %84 : vector<1x16xf32>
    %88 = arith.subf %86, %87 : vector<1x16xf32>
    %cst_27 = arith.constant 9.99999974E-6 : f32
    %89 = vector.broadcast %cst_27 : f32 to vector<1x16xf32>
    %90 = arith.addf %88, %89 : vector<1x16xf32>
    %91 = math.rsqrt %90 : vector<1x16xf32>
    %92 = vector.broadcast %84 : vector<1x16xf32> to vector<64x16xf32>
    %93 = arith.subf %77, %92 : vector<64x16xf32>
    %94 = vector.broadcast %91 : vector<1x16xf32> to vector<64x16xf32>
    %95 = arith.mulf %93, %94 : vector<64x16xf32>
    %96 = vector.extract_strided_slice %48 {offsets = [2, 0], sizes = [1, 16], strides = [1, 1]} : vector<4x16xf32> to vector<1x16xf32>
    %97 = vector.broadcast %96 : vector<1x16xf32> to vector<64x16xf32>
    %98 = arith.mulf %95, %97 : vector<64x16xf32>
    %99 = vector.extract_strided_slice %48 {offsets = [3, 0], sizes = [1, 16], strides = [1, 1]} : vector<4x16xf32> to vector<1x16xf32>
    %100 = vector.broadcast %99 : vector<1x16xf32> to vector<64x16xf32>
    %101 = arith.addf %98, %100 : vector<64x16xf32>
    %cst_28 = arith.constant 0.000000e+00 : f32
    %102 = vector.broadcast %cst_28 : f32 to vector<64x16xf32>
    %103 = arith.cmpf oge, %101, %102 : vector<64x16xf32>
    %cst_29 = arith.constant 1.000000e-01 : f32
    %104 = vector.broadcast %cst_29 : f32 to vector<64x16xf32>
    %105 = arith.mulf %104, %101 : vector<64x16xf32>
    %106 = arith.select %103, %101, %105 : vector<64x16xi1>, vector<64x16xf32>
    %107 = arith.truncf %106 : vector<64x16xf32> to vector<64x16xbf16>
    %c0_30 = arith.constant 0 : index
    %c0_31 = arith.constant 0 : index
    %108 = vector.load %arg4[%c0_30, %c0_31] : memref<16x64xbf16, #tpu.memory_space<vmem>>, vector<16x64xbf16>
    %cst_32 = arith.constant dense<0.000000e+00> : vector<64x64xf32>
    %109 = tpu.matmul %107, %108, %cst_32 {dimension_numbers = #tpu.dot_dimension_numbers<[1], [0], [0], [1], [0, 0, 1, 1], [], []>} : vector<64x16xbf16>, vector<16x64xbf16>, vector<64x64xf32> -> vector<64x64xf32>
    %110 = arith.addf %109, %46 : vector<64x64xf32>
    %c0_33 = arith.constant 0 : index
    %c0_34 = arith.constant 0 : index
    %111 = vector.load %arg5[%c0_33, %c0_34] : memref<64x64xf32, #tpu.memory_space<vmem>>, vector<64x64xf32>
    tpu.vector_store %arg5[%c0_33, %c0_34], %110 {strides = array<i32>} : memref<64x64xf32, #tpu.memory_space<vmem>>, vector<64x64xf32>,
    return
  }
}

</mosaic_0001>

<llo_original>
// kernel: tpu_custom_call.1
$region0: #{tpu_custom_call.1}
  #allocation0 [shape = 'u32[]', space=smem, size = 0x4, offset = 0x4, fixed_abs, tag = 'smem constant byte address 0x4 - core index']
  #allocation1 [shape = 'u32[72,128]{1,0:T(1,128)}', space=vmem, size = 0x9000, scoped, tag = 'internal scratch']
  %s0 = inlined_call_operand.vmem [shape: f32[64,32], index: 0, kind: input, shape index: {}]
  %s1 = inlined_call_operand.vmem [shape: f32[4,32], index: 1, kind: input, shape index: {}]
  %s2 = inlined_call_operand.vmem [shape: f32[4,16], index: 2, kind: input, shape index: {}]
  %s3 = inlined_call_operand.vmem [shape: bf16[64,128], index: 3, kind: input, shape index: {}]
  %s4 = inlined_call_operand.vmem [shape: bf16[16,64], index: 4, kind: input, shape index: {}]
  %s5 = inlined_call_operand.hbm [shape: f32[64,64], index: 5, kind: output, shape index: {}]
  %s6 = sld [smem:[#allocation0]]
  $region30: #{tpu_custom_call.1} parent=0
    _
  %s8 = ssub.s32 1, %s6
  %s9 = scalar_select 0, %s8, %s6
  $region1: #{tpu_custom_call.1} parent=0
    #allocation2 [shape = 'u8[32768]{0}', space=vmem, size = 0x8000, scoped, tag = 'output window, operand 0, single buffered']
    #allocation3 [shape = 's32[1]{0}', space=sflag, size = 0x4, scoped, tag = 'scoped memory for tpu_custom_call.1']
    %10 = vsyncpa [#allocation3], 0
    // Predicated region
    $region2: #{tpu_custom_call.1} parent=1 // pred_check
      _
    $region3: #{tpu_custom_call.1} parent=1 // pred_check_branch
      %12 = sbr.rel (0) target = $region5
    $region4: #{tpu_custom_call.1} parent=1 // pred_region
      _
    $region5: #{tpu_custom_call.1} parent=1 // pred_fallthru
      _
    // Predicated region
    $region6: #{tpu_custom_call.1} parent=1 // pred_check
      _
    $region7: #{tpu_custom_call.1} parent=1 // pred_check_branch
      %14 = sbr.rel (0) target = $region9
    $region8: #{tpu_custom_call.1} parent=1 // pred_region
      _
    $region9: #{tpu_custom_call.1} parent=1 // pred_fallthru
      _
    // Predicated region
    $region10: #{tpu_custom_call.1} parent=1 // pred_check
      _
    $region11: #{tpu_custom_call.1} parent=1 // pred_check_branch
      %16 = sbr.rel (0) target = $region13
    $region12: #{tpu_custom_call.1} parent=1 // pred_region
      _
    $region13: #{tpu_custom_call.1} parent=1 // pred_fallthru
      _
    // Predicated region
    $region14: #{tpu_custom_call.1} parent=1 // pred_check
      _
    $region15: #{tpu_custom_call.1} parent=1 // pred_check_branch
      %18 = sbr.rel (0) target = $region17
    $region16: #{tpu_custom_call.1} parent=1 // pred_region
      _
    $region17: #{tpu_custom_call.1} parent=1 // pred_fallthru
      _
    // Predicated region
    $region18: #{tpu_custom_call.1} parent=1 // pred_check
      _
    $region19: #{tpu_custom_call.1} parent=1 // pred_check_branch
      %20 = sbr.rel (0) target = $region21
    $region20: #{tpu_custom_call.1} parent=1 // pred_region
      _
    $region21: #{tpu_custom_call.1} parent=1 // pred_fallthru
      _
    %v22 = vld [vmem:[%s0] sm:$0xff]
    %v23 = vld [vmem:[%s0 + $0x8] sm:$0xff]
    %v24 = vld [vmem:[%s0 + $0x10] sm:$0xff]
    %v25 = vld [vmem:[%s0 + $0x18] sm:$0xff]
    %v26 = vld [vmem:[%s0 + $0x20] sm:$0xff]
    %v27 = vld [vmem:[%s0 + $0x28] sm:$0xff]
    %v28 = vld [vmem:[%s0 + $0x30] sm:$0xff]
    %v29 = vld [vmem:[%s0 + $0x38] sm:$0xff]
    %vm30 = vcmask 261120
    %v31 = vsel %vm30, %v22, 0.0
    %v32 = vsel %vm30, %v23, 0.0
    %v33 = vadd.f32 %v31, %v32
    %v34 = vsel %vm30, %v24, 0.0
    %v35 = vadd.f32 %v33, %v34
    %v36 = vsel %vm30, %v25, 0.0
    %v37 = vadd.f32 %v35, %v36
    %v38 = vsel %vm30, %v26, 0.0
    %v39 = vadd.f32 %v37, %v38
    %v40 = vsel %vm30, %v27, 0.0
    %v41 = vadd.f32 %v39, %v40
    %v42 = vsel %vm30, %v28, 0.0
    %v43 = vadd.f32 %v41, %v42
    %v44 = vsel %vm30, %v29, 0.0
    %v45 = vadd.f32 %v43, %v44
    %v46 = vrot.slane %v45, 4
    %v47 = vadd.f32 %v45, %v46
    %v48 = vrot.slane %v47, 2
    %v49 = vadd.f32 %v47, %v48
    %v50 = vrot.slane %v49, 1
    %v51 = vadd.f32 %v49, %v50
    %v52 = vmul.f32 %v22, %v22
    %v53 = vmul.f32 %v23, %v23
    %v54 = vmul.f32 %v24, %v24
    %v55 = vmul.f32 %v25, %v25
    %v56 = vmul.f32 %v26, %v26
    %v57 = vmul.f32 %v27, %v27
    %v58 = vmul.f32 %v28, %v28
    %v59 = vmul.f32 %v29, %v29
    %v60 = vsel %vm30, %v52, 0.0
    %v61 = vsel %vm30, %v53, 0.0
    %v62 = vadd.f32 %v60, %v61
    %v63 = vsel %vm30, %v54, 0.0
    %v64 = vadd.f32 %v62, %v63
    %v65 = vsel %vm30, %v55, 0.0
    %v66 = vadd.f32 %v64, %v65
    %v67 = vsel %vm30, %v56, 0.0
    %v68 = vadd.f32 %v66, %v67
    %v69 = vsel %vm30, %v57, 0.0
    %v70 = vadd.f32 %v68, %v69
    %v71 = vsel %vm30, %v58, 0.0
    %v72 = vadd.f32 %v70, %v71
    %v73 = vsel %vm30, %v59, 0.0
    %v74 = vadd.f32 %v72, %v73
    %v75 = vrot.slane %v74, 4
    %v76 = vadd.f32 %v74, %v75
    %v77 = vrot.slane %v76, 2
    %v78 = vadd.f32 %v76, %v77
    %v79 = vrot.slane %v78, 1
    %v80 = vadd.f32 %v78, %v79
    %v81 = vmul.f32 %v51, 0.015625
    %v82 = vmul.f32 %v80, 0.015625
    %v83 = vmul.f32 %v81, %v81
    %v84 = vsub.f32 %v82, %v83
    %v85 = vadd.f32 %v84, 1e-05
    %v86 = vrsqrt.pop %v85
    %v87 = vmul.f32 %v86, %v85
    %v88 = vmul.f32 %v87, %v86
    %v89 = vmul.f32 0.5, %v88
    %v90 = vsub.f32 1.5, %v89
    %v91 = vmul.f32 %v86, %v90
    %vm92 = vweird.f32 %v85
    %vm93 = vweird.f32 %v86
    %vm94 = vmor %vm92, %vm93
    %v95 = vsel %vm94, %v86, %v91
    %v96 = vsub.f32 %v22, %v81
    %v97 = vsub.f32 %v23, %v81
    %v98 = vsub.f32 %v24, %v81
    %v99 = vsub.f32 %v25, %v81
    %v100 = vsub.f32 %v26, %v81
    %v101 = vsub.f32 %v27, %v81
    %v102 = vsub.f32 %v28, %v81
    %v103 = vsub.f32 %v29, %v81
    %v104 = vmul.f32 %v96, %v95
    %v105 = vmul.f32 %v97, %v95
    %v106 = vmul.f32 %v98, %v95
    %v107 = vmul.f32 %v99, %v95
    %v108 = vmul.f32 %v100, %v95
    %v109 = vmul.f32 %v101, %v95
    %v110 = vmul.f32 %v102, %v95
    %v111 = vmul.f32 %v103, %v95
    %v112 = vld [vmem:[%s1] sm:$0xf]
    %v113 = vperm.slane %v112, 0
    %v114 = vmul.f32 %v104, %v113
    %v115 = vmul.f32 %v105, %v113
    %v116 = vmul.f32 %v106, %v113
    %v117 = vmul.f32 %v107, %v113
    %v118 = vmul.f32 %v108, %v113
    %v119 = vmul.f32 %v109, %v113
    %v120 = vmul.f32 %v110, %v113
    %v121 = vmul.f32 %v111, %v113
    %v122 = vperm.slane %v112, 1
    %v123 = vadd.f32 %v114, %v122
    %v124 = vadd.f32 %v115, %v122
    %v125 = vadd.f32 %v116, %v122
    %v126 = vadd.f32 %v117, %v122
    %v127 = vadd.f32 %v118, %v122
    %v128 = vadd.f32 %v119, %v122
    %v129 = vadd.f32 %v120, %v122
    %v130 = vadd.f32 %v121, %v122
    %vm131 = vcmp.ge.f32.partialorder %v123, 0.0
    %vm132 = vcmp.ge.f32.partialorder %v124, 0.0
    %vm133 = vcmp.ge.f32.partialorder %v125, 0.0
    %vm134 = vcmp.ge.f32.partialorder %v126, 0.0
    %vm135 = vcmp.ge.f32.partialorder %v127, 0.0
    %vm136 = vcmp.ge.f32.partialorder %v128, 0.0
    %vm137 = vcmp.ge.f32.partialorder %v129, 0.0
    %vm138 = vcmp.ge.f32.partialorder %v130, 0.0
    %v139 = vmul.f32 %v123, 0.1
    %v140 = vmul.f32 %v124, 0.1
    %v141 = vmul.f32 %v125, 0.1
    %v142 = vmul.f32 %v126, 0.1
    %v143 = vmul.f32 %v127, 0.1
    %v144 = vmul.f32 %v128, 0.1
    %v145 = vmul.f32 %v129, 0.1
    %v146 = vmul.f32 %v130, 0.1
    %v147 = vsel %vm131, %v123, %v139
    %v148 = vsel %vm132, %v124, %v140
    %v149 = vsel %vm133, %v125, %v141
    %v150 = vsel %vm134, %v126, %v142
    %v151 = vsel %vm135, %v127, %v143
    %v152 = vsel %vm136, %v128, %v144
    %v153 = vsel %vm137, %v129, %v145
    %v154 = vsel %vm138, %v130, %v146
    %v155 = vperm.slane %v112, 2
    %v156 = vmul.f32 %v104, %v155
    %v157 = vmul.f32 %v105, %v155
    %v158 = vmul.f32 %v106, %v155
    %v159 = vmul.f32 %v107, %v155
    %v160 = vmul.f32 %v108, %v155
    %v161 = vmul.f32 %v109, %v155
    %v162 = vmul.f32 %v110, %v155
    %v163 = vmul.f32 %v111, %v155
    %v164 = vperm.slane %v112, 3
    %v165 = vadd.f32 %v156, %v164
    %v166 = vadd.f32 %v157, %v164
    %v167 = vadd.f32 %v158, %v164
    %v168 = vadd.f32 %v159, %v164
    %v169 = vadd.f32 %v160, %v164
    %v170 = vadd.f32 %v161, %v164
    %v171 = vadd.f32 %v162, %v164
    %v172 = vadd.f32 %v163, %v164
    %vm173 = vcmp.ge.f32.partialorder %v165, 0.0
    %vm174 = vcmp.ge.f32.partialorder %v166, 0.0
    %vm175 = vcmp.ge.f32.partialorder %v167, 0.0
    %vm176 = vcmp.ge.f32.partialorder %v168, 0.0
    %vm177 = vcmp.ge.f32.partialorder %v169, 0.0
    %vm178 = vcmp.ge.f32.partialorder %v170, 0.0
    %vm179 = vcmp.ge.f32.partialorder %v171, 0.0
    %vm180 = vcmp.ge.f32.partialorder %v172, 0.0
    %v181 = vmul.f32 %v165, 0.1
    %v182 = vmul.f32 %v166, 0.1
    %v183 = vmul.f32 %v167, 0.1
    %v184 = vmul.f32 %v168, 0.1
    %v185 = vmul.f32 %v169, 0.1
    %v186 = vmul.f32 %v170, 0.1
    %v187 = vmul.f32 %v171, 0.1
    %v188 = vmul.f32 %v172, 0.1
    %v189 = vsel %vm173, %v165, %v181
    %v190 = vsel %vm174, %v166, %v182
    %v191 = vsel %vm175, %v167, %v183
    %v192 = vsel %vm176, %v168, %v184
    %v193 = vsel %vm177, %v169, %v185
    %v194 = vsel %vm178, %v170, %v186
    %v195 = vsel %vm179, %v171, %v187
    %v196 = vsel %vm180, %v172, %v188
    %205 = vrot.lane.b32.xlu0 %v189, 32
    %v206 = vpop.permute.xlu0 %205
    %207 = vrot.lane.b32.xlu0 %v190, 32
    %v208 = vpop.permute.xlu0 %207
    %209 = vrot.lane.b32.xlu0 %v191, 32
    %v210 = vpop.permute.xlu0 %209
    %211 = vrot.lane.b32.xlu0 %v192, 32
    %v212 = vpop.permute.xlu0 %211
    %213 = vrot.lane.b32.xlu0 %v193, 32
    %v214 = vpop.permute.xlu0 %213
    %215 = vrot.lane.b32.xlu0 %v194, 32
    %v216 = vpop.permute.xlu0 %215
    %217 = vrot.lane.b32.xlu0 %v195, 32
    %v218 = vpop.permute.xlu0 %217
    %219 = vrot.lane.b32.xlu0 %v196, 32
    %v220 = vpop.permute.xlu0 %219
    %v229 = vsel %vm30, %v147, %v206
    %v230 = vsel %vm30, %v148, %v208
    %v231 = vsel %vm30, %v149, %v210
    %v232 = vsel %vm30, %v150, %v212
    %v233 = vsel %vm30, %v151, %v214
    %v234 = vsel %vm30, %v152, %v216
    %v235 = vsel %vm30, %v153, %v218
    %v236 = vsel %vm30, %v154, %v220
    %v237 = vpack.c.bf16 %v230, %v229
    %v238 = vpack.c.bf16 %v232, %v231
    %v239 = vpack.c.bf16 %v234, %v233
    %v240 = vpack.c.bf16 %v236, %v235
    %v241 = vld [vmem:[%s3] sm:$0xf]
    %v242 = vld [vmem:[%s3 + $0x4] sm:$0xf]
    %v243 = vld [vmem:[%s3 + $0x8] sm:$0xf]
    %v244 = vld [vmem:[%s3 + $0xc] sm:$0xf]
    %v245 = vld [vmem:[%s3 + $0x10] sm:$0xf]
    %v246 = vld [vmem:[%s3 + $0x14] sm:$0xf]
    %v247 = vld [vmem:[%s3 + $0x18] sm:$0xf]
    %v248 = vld [vmem:[%s3 + $0x1c] sm:$0xf]
    %v257 = vunpack.c.l.b16 %v241
    %v258 = vunpack.c.l.b16 %v242
    %v259 = vunpack.c.l.b16 %v243
    %v260 = vunpack.c.l.b16 %v244
    %v261 = vunpack.c.l.b16 %v245
    %v262 = vunpack.c.l.b16 %v246
    %v263 = vunpack.c.l.b16 %v247
    %v264 = vunpack.c.l.b16 %v248
    %v265 = vpack.c.b16 %v258, %v257
    %v266 = vpack.c.b16 %v260, %v259
    %v267 = vpack.c.b16 %v262, %v261
    %v268 = vpack.c.b16 %v264, %v263
    %vm273 = vcmask 523264
    %v275 = vsel %vm273, %v237, 0
    %v278 = vsel %vm273, %v238, 0
    %v281 = vsel %vm273, %v239, 0
    %v284 = vsel %vm273, %v240, 0
    %286 = vmatpush.bf16.msra.mxu0 0
    %287 = vmatpush.bf16.msra.mxu0 0
    %288 = vmatpush.bf16.msra.mxu0 0
    %289 = vmatpush.bf16.msra.mxu0 0
    %290 = vmatpush.bf16.msra.mxu0 %v268
    %291 = vmatpush.bf16.msra.mxu0 %v267
    %292 = vmatpush.bf16.msra.mxu0 %v266
    %293 = vmatpush.bf16.msra.mxu0 %v265
    %294 = vmatmul.bf16.gmra.mxu0 %v275
    %v295 = vpop.f32.mrf.mxu0
    %v296 = vadd.f32 0.0, %v295
    %v297 = vpop.f32.mrf.mxu0
    %v298 = vadd.f32 0.0, %v297
    %299 = vmatmul.bf16.gmra.mxu0 %v278
    %v300 = vpop.f32.mrf.mxu0
    %v301 = vadd.f32 0.0, %v300
    %v302 = vpop.f32.mrf.mxu0
    %v303 = vadd.f32 0.0, %v302
    %304 = vmatmul.bf16.gmra.mxu0 %v281
    %v305 = vpop.f32.mrf.mxu0
    %v306 = vadd.f32 0.0, %v305
    %v307 = vpop.f32.mrf.mxu0
    %v308 = vadd.f32 0.0, %v307
    %309 = vmatmul.bf16.gmra.mxu0 %v284
    %v310 = vpop.f32.mrf.mxu0
    %v311 = vadd.f32 0.0, %v310
    %v312 = vpop.f32.mrf.mxu0
    %v313 = vadd.f32 0.0, %v312
    %314 = vdwg.mxu0
    %v315 = vld [vmem:[%s2] sm:$0xf]
    %vm316 = vcmask 654848
    %v317 = vsel %vm316, %v296, 0.0
    %v318 = vsel %vm316, %v298, 0.0
    %v319 = vadd.f32 %v317, %v318
    %v320 = vsel %vm316, %v301, 0.0
    %v321 = vadd.f32 %v319, %v320
    %v322 = vsel %vm316, %v303, 0.0
    %v323 = vadd.f32 %v321, %v322
    %v324 = vsel %vm316, %v306, 0.0
    %v325 = vadd.f32 %v323, %v324
    %v326 = vsel %vm316, %v308, 0.0
    %v327 = vadd.f32 %v325, %v326
    %v328 = vsel %vm316, %v311, 0.0
    %v329 = vadd.f32 %v327, %v328
    %v330 = vsel %vm316, %v313, 0.0
    %v331 = vadd.f32 %v329, %v330
    %v332 = vrot.slane %v331, 4
    %v333 = vadd.f32 %v331, %v332
    %v334 = vrot.slane %v333, 2
    %v335 = vadd.f32 %v333, %v334
    %v336 = vrot.slane %v335, 1
    %v337 = vadd.f32 %v335, %v336
    %v338 = vmul.f32 %v296, %v296
    %v339 = vmul.f32 %v298, %v298
    %v340 = vmul.f32 %v301, %v301
    %v341 = vmul.f32 %v303, %v303
    %v342 = vmul.f32 %v306, %v306
    %v343 = vmul.f32 %v308, %v308
    %v344 = vmul.f32 %v311, %v311
    %v345 = vmul.f32 %v313, %v313
    %v346 = vsel %vm316, %v338, 0.0
    %v347 = vsel %vm316, %v339, 0.0
    %v348 = vadd.f32 %v346, %v347
    %v349 = vsel %vm316, %v340, 0.0
    %v350 = vadd.f32 %v348, %v349
    %v351 = vsel %vm316, %v341, 0.0
    %v352 = vadd.f32 %v350, %v351
    %v353 = vsel %vm316, %v342, 0.0
    %v354 = vadd.f32 %v352, %v353
    %v355 = vsel %vm316, %v343, 0.0
    %v356 = vadd.f32 %v354, %v355
    %v357 = vsel %vm316, %v344, 0.0
    %v358 = vadd.f32 %v356, %v357
    %v359 = vsel %vm316, %v345, 0.0
    %v360 = vadd.f32 %v358, %v359
    %v361 = vrot.slane %v360, 4
    %v362 = vadd.f32 %v360, %v361
    %v363 = vrot.slane %v362, 2
    %v364 = vadd.f32 %v362, %v363
    %v365 = vrot.slane %v364, 1
    %v366 = vadd.f32 %v364, %v365
    %v367 = vmul.f32 %v337, 0.015625
    %v368 = vmul.f32 %v366, 0.015625
    %v369 = vmul.f32 %v367, %v367
    %v370 = vsub.f32 %v368, %v369
    %v371 = vadd.f32 %v370, 1e-05
    %v372 = vrsqrt.pop %v371
    %v373 = vmul.f32 %v372, %v371
    %v374 = vmul.f32 %v373, %v372
    %v375 = vmul.f32 0.5, %v374
    %v376 = vsub.f32 1.5, %v375
    %v377 = vmul.f32 %v372, %v376
    %vm378 = vweird.f32 %v371
    %vm379 = vweird.f32 %v372
    %vm380 = vmor %vm378, %vm379
    %v381 = vsel %vm380, %v372, %v377
    %v382 = vsub.f32 %v296, %v367
    %v383 = vsub.f32 %v298, %v367
    %v384 = vsub.f32 %v301, %v367
    %v385 = vsub.f32 %v303, %v367
    %v386 = vsub.f32 %v306, %v367
    %v387 = vsub.f32 %v308, %v367
    %v388 = vsub.f32 %v311, %v367
    %v389 = vsub.f32 %v313, %v367
    %v390 = vmul.f32 %v382, %v381
    %v391 = vmul.f32 %v383, %v381
    %v392 = vmul.f32 %v384, %v381
    %v393 = vmul.f32 %v385, %v381
    %v394 = vmul.f32 %v386, %v381
    %v395 = vmul.f32 %v387, %v381
    %v396 = vmul.f32 %v388, %v381
    %v397 = vmul.f32 %v389, %v381
    %v398 = vperm.slane %v315, 0
    %400 = vrot.lane.b32.xlu0 %v398, 64
    %v401 = vpop.permute.xlu0 %400
    %v403 = vmul.f32 %v390, %v401
    %v404 = vmul.f32 %v391, %v401
    %v405 = vmul.f32 %v392, %v401
    %v406 = vmul.f32 %v393, %v401
    %v407 = vmul.f32 %v394, %v401
    %v408 = vmul.f32 %v395, %v401
    %v409 = vmul.f32 %v396, %v401
    %v410 = vmul.f32 %v397, %v401
    %v411 = vperm.slane %v315, 1
    %413 = vrot.lane.b32.xlu0 %v411, 64
    %v414 = vpop.permute.xlu0 %413
    %v416 = vadd.f32 %v403, %v414
    %v417 = vadd.f32 %v404, %v414
    %v418 = vadd.f32 %v405, %v414
    %v419 = vadd.f32 %v406, %v414
    %v420 = vadd.f32 %v407, %v414
    %v421 = vadd.f32 %v408, %v414
    %v422 = vadd.f32 %v409, %v414
    %v423 = vadd.f32 %v410, %v414
    %vm424 = vcmp.ge.f32.partialorder %v416, 0.0
    %vm425 = vcmp.ge.f32.partialorder %v417, 0.0
    %vm426 = vcmp.ge.f32.partialorder %v418, 0.0
    %vm427 = vcmp.ge.f32.partialorder %v419, 0.0
    %vm428 = vcmp.ge.f32.partialorder %v420, 0.0
    %vm429 = vcmp.ge.f32.partialorder %v421, 0.0
    %vm430 = vcmp.ge.f32.partialorder %v422, 0.0
    %vm431 = vcmp.ge.f32.partialorder %v423, 0.0
    %v432 = vmul.f32 %v416, 0.1
    %v433 = vmul.f32 %v417, 0.1
    %v434 = vmul.f32 %v418, 0.1
    %v435 = vmul.f32 %v419, 0.1
    %v436 = vmul.f32 %v420, 0.1
    %v437 = vmul.f32 %v421, 0.1
    %v438 = vmul.f32 %v422, 0.1
    %v439 = vmul.f32 %v423, 0.1
    %v440 = vsel %vm424, %v416, %v432
    %v441 = vsel %vm425, %v417, %v433
    %v442 = vsel %vm426, %v418, %v434
    %v443 = vsel %vm427, %v419, %v435
    %v444 = vsel %vm428, %v420, %v436
    %v445 = vsel %vm429, %v421, %v437
    %v446 = vsel %vm430, %v422, %v438
    %v447 = vsel %vm431, %v423, %v439
    %v448 = vsel %vm316, %v440, 0.0
    %v449 = vsel %vm316, %v441, 0.0
    %v450 = vadd.f32 %v448, %v449
    %v451 = vsel %vm316, %v442, 0.0
    %v452 = vadd.f32 %v450, %v451
    %v453 = vsel %vm316, %v443, 0.0
    %v454 = vadd.f32 %v452, %v453
    %v455 = vsel %vm316, %v444, 0.0
    %v456 = vadd.f32 %v454, %v455
    %v457 = vsel %vm316, %v445, 0.0
    %v458 = vadd.f32 %v456, %v457
    %v459 = vsel %vm316, %v446, 0.0
    %v460 = vadd.f32 %v458, %v459
    %v461 = vsel %vm316, %v447, 0.0
    %v462 = vadd.f32 %v460, %v461
    %v463 = vrot.slane %v462, 4
    %v464 = vadd.f32 %v462, %v463
    %v465 = vrot.slane %v464, 2
    %v466 = vadd.f32 %v464, %v465
    %v467 = vrot.slane %v466, 1
    %v468 = vadd.f32 %v466, %v467
    %v469 = vmul.f32 %v440, %v440
    %v470 = vmul.f32 %v441, %v441
    %v471 = vmul.f32 %v442, %v442
    %v472 = vmul.f32 %v443, %v443
    %v473 = vmul.f32 %v444, %v444
    %v474 = vmul.f32 %v445, %v445
    %v475 = vmul.f32 %v446, %v446
    %v476 = vmul.f32 %v447, %v447
    %v477 = vsel %vm316, %v469, 0.0
    %v478 = vsel %vm316, %v470, 0.0
    %v479 = vadd.f32 %v477, %v478
    %v480 = vsel %vm316, %v471, 0.0
    %v481 = vadd.f32 %v479, %v480
    %v482 = vsel %vm316, %v472, 0.0
    %v483 = vadd.f32 %v481, %v482
    %v484 = vsel %vm316, %v473, 0.0
    %v485 = vadd.f32 %v483, %v484
    %v486 = vsel %vm316, %v474, 0.0
    %v487 = vadd.f32 %v485, %v486
    %v488 = vsel %vm316, %v475, 0.0
    %v489 = vadd.f32 %v487, %v488
    %v490 = vsel %vm316, %v476, 0.0
    %v491 = vadd.f32 %v489, %v490
    %v492 = vrot.slane %v491, 4
    %v493 = vadd.f32 %v491, %v492
    %v494 = vrot.slane %v493, 2
    %v495 = vadd.f32 %v493, %v494
    %v496 = vrot.slane %v495, 1
    %v497 = vadd.f32 %v495, %v496
    %v498 = vmul.f32 %v468, 0.015625
    %v499 = vmul.f32 %v497, 0.015625
    %v500 = vmul.f32 %v498, %v498
    %v501 = vsub.f32 %v499, %v500
    %v502 = vadd.f32 %v501, 1e-05
    %v503 = vrsqrt.pop %v502
    %v504 = vmul.f32 %v503, %v502
    %v505 = vmul.f32 %v504, %v503
    %v506 = vmul.f32 0.5, %v505
    %v507 = vsub.f32 1.5, %v506
    %v508 = vmul.f32 %v503, %v507
    %vm509 = vweird.f32 %v502
    %vm510 = vweird.f32 %v503
    %vm511 = vmor %vm509, %vm510
    %v512 = vsel %vm511, %v503, %v508
    %v513 = vsub.f32 %v440, %v498
    %v514 = vsub.f32 %v441, %v498
    %v515 = vsub.f32 %v442, %v498
    %v516 = vsub.f32 %v443, %v498
    %v517 = vsub.f32 %v444, %v498
    %v518 = vsub.f32 %v445, %v498
    %v519 = vsub.f32 %v446, %v498
    %v520 = vsub.f32 %v447, %v498
    %v521 = vmul.f32 %v513, %v512
    %v522 = vmul.f32 %v514, %v512
    %v523 = vmul.f32 %v515, %v512
    %v524 = vmul.f32 %v516, %v512
    %v525 = vmul.f32 %v517, %v512
    %v526 = vmul.f32 %v518, %v512
    %v527 = vmul.f32 %v519, %v512
    %v528 = vmul.f32 %v520, %v512
    %v529 = vperm.slane %v315, 2
    %531 = vrot.lane.b32.xlu0 %v529, 64
    %v532 = vpop.permute.xlu0 %531
    %v534 = vmul.f32 %v521, %v532
    %v535 = vmul.f32 %v522, %v532
    %v536 = vmul.f32 %v523, %v532
    %v537 = vmul.f32 %v524, %v532
    %v538 = vmul.f32 %v525, %v532
    %v539 = vmul.f32 %v526, %v532
    %v540 = vmul.f32 %v527, %v532
    %v541 = vmul.f32 %v528, %v532
    %v542 = vperm.slane %v315, 3
    %544 = vrot.lane.b32.xlu0 %v542, 64
    %v545 = vpop.permute.xlu0 %544
    %v547 = vadd.f32 %v534, %v545
    %v548 = vadd.f32 %v535, %v545
    %v549 = vadd.f32 %v536, %v545
    %v550 = vadd.f32 %v537, %v545
    %v551 = vadd.f32 %v538, %v545
    %v552 = vadd.f32 %v539, %v545
    %v553 = vadd.f32 %v540, %v545
    %v554 = vadd.f32 %v541, %v545
    %vm555 = vcmp.ge.f32.partialorder %v547, 0.0
    %vm556 = vcmp.ge.f32.partialorder %v548, 0.0
    %vm557 = vcmp.ge.f32.partialorder %v549, 0.0
    %vm558 = vcmp.ge.f32.partialorder %v550, 0.0
    %vm559 = vcmp.ge.f32.partialorder %v551, 0.0
    %vm560 = vcmp.ge.f32.partialorder %v552, 0.0
    %vm561 = vcmp.ge.f32.partialorder %v553, 0.0
    %vm562 = vcmp.ge.f32.partialorder %v554, 0.0
    %v563 = vmul.f32 %v547, 0.1
    %v564 = vmul.f32 %v548, 0.1
    %v565 = vmul.f32 %v549, 0.1
    %v566 = vmul.f32 %v550, 0.1
    %v567 = vmul.f32 %v551, 0.1
    %v568 = vmul.f32 %v552, 0.1
    %v569 = vmul.f32 %v553, 0.1
    %v570 = vmul.f32 %v554, 0.1
    %v571 = vsel %vm555, %v547, %v563
    %v572 = vsel %vm556, %v548, %v564
    %v573 = vsel %vm557, %v549, %v565
    %v574 = vsel %vm558, %v550, %v566
    %v575 = vsel %vm559, %v551, %v567
    %v576 = vsel %vm560, %v552, %v568
    %v577 = vsel %vm561, %v553, %v569
    %v578 = vsel %vm562, %v554, %v570
    %v579 = vpack.c.bf16 %v572, %v571
    %v580 = vpack.c.bf16 %v574, %v573
    %v581 = vpack.c.bf16 %v576, %v575
    %v582 = vpack.c.bf16 %v578, %v577
    %v583 = vld [vmem:[%s4] sm:$0xf]
    %v584 = vld [vmem:[%s4 + $0x4] sm:$0xf]
    %589 = vrot.lane.b32.xlu0 %v579, 64
    %v590 = vpop.permute.xlu0 %589
    %591 = vrot.lane.b32.xlu0 %v580, 64
    %v592 = vpop.permute.xlu0 %591
    %593 = vrot.lane.b32.xlu0 %v581, 64
    %v594 = vpop.permute.xlu0 %593
    %595 = vrot.lane.b32.xlu0 %v582, 64
    %v596 = vpop.permute.xlu0 %595
    %v599 = vunpack.c.l.b16 %v583
    %v600 = vunpack.c.l.b16 %v584
    %v601 = vpack.c.b16 %v600, %v599
    %vm603 = vcmask 130048
    %v605 = vsel %vm603, %v590, 0
    %v608 = vsel %vm603, %v592, 0
    %v611 = vsel %vm603, %v594, 0
    %v614 = vsel %vm603, %v596, 0
    %616 = vmatpush.bf16.msra.mxu0 0
    %617 = vmatpush.bf16.msra.mxu0 0
    %618 = vmatpush.bf16.msra.mxu0 0
    %619 = vmatpush.bf16.msra.mxu0 0
    %620 = vmatpush.bf16.msra.mxu0 0
    %621 = vmatpush.bf16.msra.mxu0 0
    %622 = vmatpush.bf16.msra.mxu0 0
    %623 = vmatpush.bf16.msra.mxu0 %v601
    %624 = vmatmul.bf16.gmra.mxu0 %v605
    %v625 = vpop.f32.mrf.mxu0
    %v626 = vadd.f32 %v296, %v625
    %v627 = vpop.f32.mrf.mxu0
    %v628 = vadd.f32 %v298, %v627
    %629 = vmatmul.bf16.gmra.mxu0 %v608
    %v630 = vpop.f32.mrf.mxu0
    %v631 = vadd.f32 %v301, %v630
    %v632 = vpop.f32.mrf.mxu0
    %v633 = vadd.f32 %v303, %v632
    %634 = vmatmul.bf16.gmra.mxu0 %v611
    %v635 = vpop.f32.mrf.mxu0
    %v636 = vadd.f32 %v306, %v635
    %v637 = vpop.f32.mrf.mxu0
    %v638 = vadd.f32 %v308, %v637
    %639 = vmatmul.bf16.gmra.mxu0 %v614
    %v640 = vpop.f32.mrf.mxu0
    %v641 = vadd.f32 %v311, %v640
    %v642 = vpop.f32.mrf.mxu0
    %v643 = vadd.f32 %v313, %v642
    %644 = vdwg.mxu0
    %645 = vst.msk [vmem:[#allocation2] sm:$0xff] %vm273, %v626
    %646 = vst.msk [vmem:[#allocation2 + $0x8] sm:$0xff] %vm273, %v628
    %647 = vst.msk [vmem:[#allocation2 + $0x10] sm:$0xff] %vm273, %v631
    %648 = vst.msk [vmem:[#allocation2 + $0x18] sm:$0xff] %vm273, %v633
    %649 = vst.msk [vmem:[#allocation2 + $0x20] sm:$0xff] %vm273, %v636
    %650 = vst.msk [vmem:[#allocation2 + $0x28] sm:$0xff] %vm273, %v638
    %651 = vst.msk [vmem:[#allocation2 + $0x30] sm:$0xff] %vm273, %v641
    %652 = vst.msk [vmem:[#allocation2 + $0x38] sm:$0xff] %vm273, %v643
    // Predicated region
    $region22: #{tpu_custom_call.1} parent=1 // pred_check
      _
    $region23: #{tpu_custom_call.1} parent=1 // pred_check_branch
      %654 = sbr.rel (0) target = $region25
    $region24: #{tpu_custom_call.1} parent=1 // pred_region
      %656 = vsyncadd [#allocation3], 0
      %s657 = sshll.u32 [#allocation2], 4
      %s658 = int_to_ptr.vmem [resolvable:$true] %s657
      %s659 = sshll.u32 %s5, 4
      %s660 = int_to_ptr.hbm [resolvable:$true] %s659
      %665 = dma.vmem_to_hbm [thread:$0]  %s658, 1024, %s660, [#allocation3], 128, 128, 8
    $region25: #{tpu_custom_call.1} parent=1 // pred_fallthru
      _
    // Predicated region
    $region26: #{tpu_custom_call.1} parent=1 // pred_check
      _
    $region27: #{tpu_custom_call.1} parent=1 // pred_check_branch
      %667 = sbr.rel (0) target = $region29
    $region28: #{tpu_custom_call.1} parent=1 // pred_region
      %669 = dma.done [#allocation3], 1024
    $region29: #{tpu_custom_call.1} parent=1 // pred_fallthru
      _
    %670 = vsyncpa [#allocation3], 1

</llo_original>
